<compile_context>
chip_gen: v5e
topology: v5e:2x2
jax: 0.10.0
libtpu: 0.0.40
codegen_flags: <defaults>
</compile_context>

<pallas_src>
import jax
import jax.numpy as jnp
from jax.experimental import pallas as pl
from jax.experimental.pallas import tpu as pltpu

IN_FEATURES = 4  # Linear(4, 4)


def _cell_math(x, h, wb):
    """One MyCell step. x, h: [N, 4]; wb rows 0..3 -> W^T, row 4 -> bias."""
    # Linear as VPU broadcast-MACs: lin = b + sum_k x[:, k] * W^T[k, :]
    lin = wb[IN_FEATURES:IN_FEATURES + 1, :] + x[:, 0:1] * wb[0:1, :]
    for k in range(1, IN_FEATURES):            # static 4-wide unroll
        lin = lin + x[:, k:k + 1] * wb[k:k + 1, :]
    # MyDecisionGate: one scalar reduce (XLU) feeding one select (VPU).
    s = jnp.sum(lin)
    gated = jnp.where(s > 0.0, lin, -lin)
    return jnp.tanh(gated + h)                 # EUP tanh


# -------------------------- single step (forward) --------------------------

def mycell_kernel(x_ref, h_ref, wb_ref, out_ref):
    out_ref[...] = _cell_math(x_ref[...], h_ref[...], wb_ref[...]).astype(out_ref.dtype)


def mycell_forward(x, h, w, b):
    """Single MyCell step (matches the PyTorch module's forward).

    x, h: [N, 4]; w: [4, 4] (PyTorch Linear weight, out x in); b: [4].
    Returns (new_h, new_h).
    """
    N, F = x.shape
    wb = jnp.concatenate([w.T, b.reshape(1, F)], axis=0)        # packed [5, 4]

    new_h = pl.pallas_call(
        mycell_kernel,
        out_shape=jax.ShapeDtypeStruct(x.shape, x.dtype),
        in_specs=[
            pl.BlockSpec(memory_space=pltpu.MemorySpace.VMEM),  # x
            pl.BlockSpec(memory_space=pltpu.MemorySpace.VMEM),  # h
            pl.BlockSpec(memory_space=pltpu.MemorySpace.VMEM),  # packed W^T | b
        ],
        out_specs=pl.BlockSpec(memory_space=pltpu.MemorySpace.VMEM),
        # Reuse h's buffer for new_h (full benefit when h is donated at a jit
        # boundary, e.g. jax.jit(mycell_forward, donate_argnums=1)).
        input_output_aliases={1: 0},
    )(x, h, wb)

    return new_h, new_h


# ------------------------ fused T-step recurrence ---------------------------

def mycell_rnn_kernel(xs_ref, slab_ref, hs_ref, h_scratch):
    t = pl.program_id(0)
    slab = slab_ref[...]                       # [F+1+N, F]: W^T | b | h0

    @pl.when(t == 0)
    def _():
        h_scratch[...] = slab[IN_FEATURES + 1:, :]   # load initial state once

    new_h = _cell_math(xs_ref[...], h_scratch[...], slab)
    h_scratch[...] = new_h                     # carry recurrent state in VMEM
    hs_ref[...] = new_h.astype(hs_ref.dtype)


def mycell_rnn(xs, h0, w, b):
    """Fused T-step rollout of MyCell inside one pallas_call.

    xs: [T, N, 4], h0: [N, 4].  Returns (all new_h per step [T, N, 4], final h).
    """
    T, N, F = xs.shape
    # Pack parameters AND the initial state into one resident slab:
    # rows 0..3 -> W^T, row 4 -> bias, rows 5..4+N -> h0.  One input stream.
    slab = jnp.concatenate(
        [w.T, b.reshape(1, F), h0.astype(jnp.float32)], axis=0)  # [F+1+N, F]

    hs = pl.pallas_call(
        mycell_rnn_kernel,
        out_shape=jax.ShapeDtypeStruct((T, N, F), xs.dtype),
        grid_spec=pltpu.PrefetchScalarGridSpec(
            num_scalar_prefetch=0,
            grid=(T,),
            in_specs=[
                pl.BlockSpec((None, N, F), lambda t: (t, 0, 0)),      # x_t streamed
                pl.BlockSpec((F + 1 + N, F), lambda t: (0, 0)),       # slab resident
            ],
            out_specs=pl.BlockSpec((None, N, F), lambda t: (t, 0, 0)),
            scratch_shapes=[pltpu.VMEM((N, F), jnp.float32)],         # carried h
        ),
        compiler_params=pltpu.CompilerParams(
            dimension_semantics=("arbitrary",)),                      # true recurrence
    )(xs, slab)

    return hs, hs[-1]


if __name__ == "__main__":
    key = jax.random.PRNGKey(0)
    kx, kh, kw, kb, ks = jax.random.split(key, 5)

    N, F, T = 3, 4, 8   # shapes implied by the module: x, h are (3, 4); Linear(4, 4)

    # torch.rand -> uniform [0, 1)
    x = jax.random.uniform(kx, (N, F), dtype=jnp.float32)
    h = jax.random.uniform(kh, (N, F), dtype=jnp.float32)
    # PyTorch-style Linear init: uniform(-1/sqrt(in), 1/sqrt(in))
    bound = 1.0 / jnp.sqrt(jnp.float32(F))
    w = jax.random.uniform(kw, (F, F), dtype=jnp.float32, minval=-bound, maxval=bound)
    b = jax.random.uniform(kb, (F,), dtype=jnp.float32, minval=-bound, maxval=bound)
    xs = jax.random.uniform(ks, (T, N, F), dtype=jnp.float32)

    # ---- pure-JAX references (computed up front, before any aliased call) ----
    lin_ref = x @ w.T + b
    gated_ref = jnp.where(jnp.sum(lin_ref) > 0, lin_ref, -lin_ref)
    step_ref = jnp.tanh(gated_ref + h)

    h_state = h
    hs_ref_steps = []
    for t in range(T):
        lin_t = xs[t] @ w.T + b
        gated_t = jnp.where(jnp.sum(lin_t) > 0, lin_t, -lin_t)
        h_state = jnp.tanh(gated_t + h_state)
        hs_ref_steps.append(h_state)
    hs_ref = jnp.stack(hs_ref_steps)

    # ---- fused recurrent rollout: T steps, one pallas_call ----
    hs, h_final = mycell_rnn(xs, h, w, b)
    jax.block_until_ready(hs)
    assert hs.shape == (T, N, F)
    assert jnp.allclose(hs, hs_ref, atol=1e-5), "recurrent mismatch vs reference"
    assert jnp.allclose(h_final, hs_ref[-1], atol=1e-5), "final-state mismatch"

    # ---- single-step call (exactly MyCell.forward), h aliased to output ----
    new_h, new_h_2 = mycell_forward(x, h, w, b)
    jax.block_until_ready(new_h)
    assert new_h.shape == (N, F) and new_h_2.shape == (N, F)
    assert jnp.allclose(new_h, step_ref, atol=1e-5), "single-step mismatch vs reference"

    print("KERNEL_OK")
</pallas_src>

<mosaic_0001>
module attributes {stable_mosaic.version = 11 : i64} {
  func.func @mycell_rnn_kernel(%arg0: i32, %arg1: memref<1x3x4xf32, #tpu.memory_space<vmem>>, %arg2: memref<8x4xf32, #tpu.memory_space<vmem>>, %arg3: memref<1x3x4xf32, #tpu.memory_space<vmem>>, %arg4: memref<3x4xf32, #tpu.memory_space<vmem>>) attributes {dimension_semantics = [#tpu.dimension_semantics<arbitrary>], iteration_bounds = array<i64: 8>, scalar_prefetch = 0 : i64, scratch_operands = 1 : i64, tpu.core_type = #tpu.core_type<tc>, window_params = [{transform_indices = @transform_0, window_bounds = array<i64: 1, 3, 4>}, {pipeline_mode = #tpu.pipeline_mode<synchronous>, transform_indices = @transform_1, window_bounds = array<i64: 8, 4>}, {transform_indices = @transform_2, window_bounds = array<i64: 1, 3, 4>}]} {
    %c0 = arith.constant 0 : index
    %c0_0 = arith.constant 0 : index
    %0 = vector.load %arg2[%c0, %c0_0] : memref<8x4xf32, #tpu.memory_space<vmem>>, vector<8x4xf32>
    %c0_i32 = arith.constant 0 : i32
    %1 = arith.cmpi eq, %arg0, %c0_i32 : i32
    %2 = arith.extui %1 : i1 to i32
    %c0_i32_1 = arith.constant 0 : i32
    %3 = arith.cmpi ne, %2, %c0_i32_1 : i32
    scf.if %3 {
      %47 = vector.extract_strided_slice %0 {offsets = [5, 0], sizes = [3, 4], strides = [1, 1]} : vector<8x4xf32> to vector<3x4xf32>
      %c0_14 = arith.constant 0 : index
      %c0_15 = arith.constant 0 : index
      %48 = vector.load %arg4[%c0_14, %c0_15] : memref<3x4xf32, #tpu.memory_space<vmem>>, vector<3x4xf32>
      tpu.vector_store %arg4[%c0_14, %c0_15], %47 {strides = array<i32>} : memref<3x4xf32, #tpu.memory_space<vmem>>, vector<3x4xf32>,
    } else {
    }
    %c0_2 = arith.constant 0 : index
    %c0_3 = arith.constant 0 : index
    %c0_4 = arith.constant 0 : index
    %4 = vector.load %arg1[%c0_2, %c0_3, %c0_4] : memref<1x3x4xf32, #tpu.memory_space<vmem>>, vector<1x3x4xf32>
    %5 = vector.shape_cast %4 : vector<1x3x4xf32> to vector<3x4xf32>
    %c0_5 = arith.constant 0 : index
    %c0_6 = arith.constant 0 : index
    %6 = vector.load %arg4[%c0_5, %c0_6] : memref<3x4xf32, #tpu.memory_space<vmem>>, vector<3x4xf32>
    %7 = vector.extract_strided_slice %0 {offsets = [4, 0], sizes = [1, 4], strides = [1, 1]} : vector<8x4xf32> to vector<1x4xf32>
    %8 = vector.extract_strided_slice %5 {offsets = [0, 0], sizes = [3, 1], strides = [1, 1]} : vector<3x4xf32> to vector<3x1xf32>
    %9 = vector.extract_strided_slice %0 {offsets = [0, 0], sizes = [1, 4], strides = [1, 1]} : vector<8x4xf32> to vector<1x4xf32>
    %10 = vector.broadcast %8 : vector<3x1xf32> to vector<3x4xf32>
    %11 = vector.broadcast %9 : vector<1x4xf32> to vector<3x4xf32>
    %12 = arith.mulf %10, %11 : vector<3x4xf32>
    %13 = vector.broadcast %7 : vector<1x4xf32> to vector<3x4xf32>
    %14 = arith.addf %13, %12 : vector<3x4xf32>
    %15 = vector.extract_strided_slice %5 {offsets = [0, 1], sizes = [3, 1], strides = [1, 1]} : vector<3x4xf32> to vector<3x1xf32>
    %16 = vector.extract_strided_slice %0 {offsets = [1, 0], sizes = [1, 4], strides = [1, 1]} : vector<8x4xf32> to vector<1x4xf32>
    %17 = vector.broadcast %15 : vector<3x1xf32> to vector<3x4xf32>
    %18 = vector.broadcast %16 : vector<1x4xf32> to vector<3x4xf32>
    %19 = arith.mulf %17, %18 : vector<3x4xf32>
    %20 = arith.addf %14, %19 : vector<3x4xf32>
    %21 = vector.extract_strided_slice %5 {offsets = [0, 2], sizes = [3, 1], strides = [1, 1]} : vector<3x4xf32> to vector<3x1xf32>
    %22 = vector.extract_strided_slice %0 {offsets = [2, 0], sizes = [1, 4], strides = [1, 1]} : vector<8x4xf32> to vector<1x4xf32>
    %23 = vector.broadcast %21 : vector<3x1xf32> to vector<3x4xf32>
    %24 = vector.broadcast %22 : vector<1x4xf32> to vector<3x4xf32>
    %25 = arith.mulf %23, %24 : vector<3x4xf32>
    %26 = arith.addf %20, %25 : vector<3x4xf32>
    %27 = vector.extract_strided_slice %5 {offsets = [0, 3], sizes = [3, 1], strides = [1, 1]} : vector<3x4xf32> to vector<3x1xf32>
    %28 = vector.extract_strided_slice %0 {offsets = [3, 0], sizes = [1, 4], strides = [1, 1]} : vector<8x4xf32> to vector<1x4xf32>
    %29 = vector.broadcast %27 : vector<3x1xf32> to vector<3x4xf32>
    %30 = vector.broadcast %28 : vector<1x4xf32> to vector<3x4xf32>
    %31 = arith.mulf %29, %30 : vector<3x4xf32>
    %32 = arith.addf %26, %31 : vector<3x4xf32>
    %33 = vector.shape_cast %32 : vector<3x4xf32> to vector<1x3x4xf32>
    %cst = arith.constant dense<0.000000e+00> : vector<1xf32>
    %34 = vector.multi_reduction <add>, %33, %cst [1, 2] : vector<1x3x4xf32> to vector<1xf32>
    %35 = vector.shape_cast %34 : vector<1xf32> to vector<1x1x1xf32>
    %36 = vector.extract %35[0, 0, 0] : f32 from vector<1x1x1xf32>
    %cst_7 = arith.constant 0.000000e+00 : f32
    %37 = arith.cmpf ogt, %36, %cst_7 : f32
    %cst_8 = arith.constant 0.000000e+00 : f32
    %38 = vector.broadcast %cst_8 : f32 to vector<3x4xf32>
    %39 = arith.subf %38, %32 : vector<3x4xf32>
    %40 = arith.select %37, %32, %39 : vector<3x4xf32>
    %41 = arith.addf %40, %6 : vector<3x4xf32>
    %42 = math.tanh %41 : vector<3x4xf32>
    %c0_9 = arith.constant 0 : index
    %c0_10 = arith.constant 0 : index
    %43 = vector.load %arg4[%c0_9, %c0_10] : memref<3x4xf32, #tpu.memory_space<vmem>>, vector<3x4xf32>
    tpu.vector_store %arg4[%c0_9, %c0_10], %42 {strides = array<i32>} : memref<3x4xf32, #tpu.memory_space<vmem>>, vector<3x4xf32>,
    %c0_11 = arith.constant 0 : index
    %c0_12 = arith.constant 0 : index
    %c0_13 = arith.constant 0 : index
    %44 = vector.load %arg3[%c0_11, %c0_12, %c0_13] : memref<1x3x4xf32, #tpu.memory_space<vmem>>, vector<1x3x4xf32>
    %45 = vector.shape_cast %44 : vector<1x3x4xf32> to vector<3x4xf32>
    %46 = vector.shape_cast %42 : vector<3x4xf32> to vector<1x3x4xf32>
    tpu.vector_store %arg3[%c0_11, %c0_12, %c0_13], %46 {strides = array<i32>} : memref<1x3x4xf32, #tpu.memory_space<vmem>>, vector<1x3x4xf32>,
    return
  }
  func.func @transform_0(%arg0: i32) -> (i32, i32, i32) {
    %c0_i32 = arith.constant 0 : i32
    %c0_i32_0 = arith.constant 0 : i32
    %c0_i32_1 = arith.constant 0 : i32
    return %arg0, %c0_i32, %c0_i32_0 : i32, i32, i32
  }
  func.func @transform_1(%arg0: i32) -> (i32, i32) {
    %c0_i32 = arith.constant 0 : i32
    %c0_i32_0 = arith.constant 0 : i32
    %c0_i32_1 = arith.constant 0 : i32
    return %c0_i32, %c0_i32_0 : i32, i32
  }
  func.func @transform_2(%arg0: i32) -> (i32, i32, i32) {
    %c0_i32 = arith.constant 0 : i32
    %c0_i32_0 = arith.constant 0 : i32
    %c0_i32_1 = arith.constant 0 : i32
    return %arg0, %c0_i32, %c0_i32_0 : i32, i32, i32
  }
}

</mosaic_0001>

<llo_original>
// kernel: tpu_custom_call.1
$region0: #{tpu_custom_call.1}
  #allocation0 [shape = 'u32[]', space=smem, size = 0x4, offset = 0x4, fixed_abs, tag = 'smem constant byte address 0x4 - core index']
  #allocation1 [shape = 'u32[72,128]{1,0:T(1,128)}', space=vmem, size = 0x9000, scoped, tag = 'internal scratch']
  #allocation2 [shape = 'f32[3,4]{1,0:T(4,128)}', space=vmem, size = 0x800, scoped, tag = 'scratch operand']
  %s0 = inlined_call_operand.vmem [shape: f32[8,3,4], index: 0, kind: input, shape index: {}]
  %s1 = inlined_call_operand.vmem [shape: f32[8,4], index: 1, kind: input, shape index: {}]
  %s2 = inlined_call_operand.vmem [shape: f32[8,3,4], index: 2, kind: output, shape index: {}]
  %s3 = sld [smem:[#allocation0]]
  $region45: #{tpu_custom_call.1} parent=0
    _
  %s5 = ssub.s32 1, %s3
  %s6 = scalar_select 0, %s5, %s3
  loop: start=0, step=1, limit=10
  $region2: #{tpu_custom_call.1} parent=0 // loop_pre_header
    _
  $region3: #{tpu_custom_call.1} parent=0 // loop_header
    %s8 = sphi 0, %s12
    %p9 = scmp.ge.s32.totalorder %s8, 10
    %s18 = sphi 0, %s20
    %s21 = sphi 0, %s18
    %s22 = sphi 0, %s21
    %s38 = sphi 0, %s22
    %s42 = sphi 0, %s42
    %s44 = sphi 0, %s42
    %s45 = sphi 0, %s44
    %s59 = sphi 0, %s45
    %s65 = sphi 0, %s67
    %s68 = sphi 0, %s65
    %s69 = sphi 0, %s68
    %s85 = sphi 0, %s69
  $region4: #{tpu_custom_call.1} parent=0 // loop_header_branch
    %11 = sbr.rel (%p9) target = $region8
  $region5: #{tpu_custom_call.1} parent=0 // loop_body
    %s13 = ssub.s32 %s8, 1
    %s14 = ssub.s32 %s8, 2
    %s15 = sadd.s32 %s8, 1
    %s16 = ssub.s32 %s8, %s15
    %p17 = scmp.eq.s32.totalorder %s16, 0
    %s19 = sadd.s32 %s18, 1
    %s20 = scalar_select %p17, %s18, %s19
    %p23 = pneg %p17
    %p24 = scmp.eq.s32.totalorder %s8, 7
    %p25 = por %p23, %p24
    %p26 = scmp.ne.s32.totalorder %s18, %s21
    %p27 = scmp.eq.s32.totalorder %s8, 0
    %p28 = por %p26, %p27
    %p29 = scmp.ne.s32.totalorder %s18, %s21
    %p30 = scmp.eq.s32.totalorder %s13, 7
    %p31 = por %p29, %p30
    %p32 = scmp.ne.s32.totalorder %s21, %s22
    %p33 = scmp.eq.s32.totalorder %s13, 0
    %p34 = por %p32, %p33
    %p35 = scmp.ne.s32.totalorder %s21, %s22
    %p36 = scmp.eq.s32.totalorder %s14, 7
    %p37 = por %p35, %p36
    %p39 = scmp.ne.s32.totalorder %s22, %s38
    %p40 = scmp.eq.s32.totalorder %s14, 0
    %p41 = por %p39, %p40
    %s43 = sadd.s32 %s42, 1
    %p46 = scmp.eq.s32.totalorder %s8, 7
    %p47 = scmp.ne.s32.totalorder %s42, %s44
    %p48 = scmp.eq.s32.totalorder %s8, 0
    %p49 = por %p47, %p48
    %p50 = scmp.ne.s32.totalorder %s42, %s44
    %p51 = scmp.eq.s32.totalorder %s13, 7
    %p52 = por %p50, %p51
    %p53 = scmp.ne.s32.totalorder %s44, %s45
    %p54 = scmp.eq.s32.totalorder %s13, 0
    %p55 = por %p53, %p54
    %p56 = scmp.ne.s32.totalorder %s44, %s45
    %p57 = scmp.eq.s32.totalorder %s14, 7
    %p58 = por %p56, %p57
    %p60 = scmp.ne.s32.totalorder %s45, %s59
    %p61 = scmp.eq.s32.totalorder %s14, 0
    %p62 = por %p60, %p61
    %s63 = ssub.s32 %s8, %s15
    %p64 = scmp.eq.s32.totalorder %s63, 0
    %s66 = sadd.s32 %s65, 1
    %s67 = scalar_select %p64, %s65, %s66
    %p70 = pneg %p64
    %p71 = scmp.eq.s32.totalorder %s8, 7
    %p72 = por %p70, %p71
    %p73 = scmp.ne.s32.totalorder %s65, %s68
    %p74 = scmp.eq.s32.totalorder %s8, 0
    %p75 = por %p73, %p74
    %p76 = scmp.ne.s32.totalorder %s65, %s68
    %p77 = scmp.eq.s32.totalorder %s13, 7
    %p78 = por %p76, %p77
    %p79 = scmp.ne.s32.totalorder %s68, %s69
    %p80 = scmp.eq.s32.totalorder %s13, 0
    %p81 = por %p79, %p80
    %p82 = scmp.ne.s32.totalorder %s68, %s69
    %p83 = scmp.eq.s32.totalorder %s14, 7
    %p84 = por %p82, %p83
    %p86 = scmp.ne.s32.totalorder %s69, %s85
    %p87 = scmp.eq.s32.totalorder %s14, 0
    %p88 = por %p86, %p87
    %p89 = scmp.le.s32.totalorder 1, %s8
    %p90 = scmp.lt.s32.totalorder %s8, 9
    %p91 = pnand %p89, %p90
    %p92 = pneg %p91
    // Predicated region
    $region9: #{tpu_custom_call.1} parent=5 // pred_check
      _
    $region10: #{tpu_custom_call.1} parent=5 // pred_check_branch
      %94 = sbr.rel (%p91) target = $region12
    $region11: #{tpu_custom_call.1} parent=5 // pred_region
      %s95 = ssub.s32 %s8, 1
      // Predicated region
      $region13: #{tpu_custom_call.1} parent=11 // pred_check
        %p96 = pneg %p55
      $region14: #{tpu_custom_call.1} parent=11 // pred_check_branch
        %98 = sbr.rel (%p96) target = $region16
      $region15: #{tpu_custom_call.1} parent=11 // pred_region
        _
      $region16: #{tpu_custom_call.1} parent=11 // pred_fallthru
        _
    $region12: #{tpu_custom_call.1} parent=5 // pred_fallthru
      _
    %p99 = scmp.lt.s32.totalorder %s8, 8
    // Predicated region
    $region17: #{tpu_custom_call.1} parent=5 // pred_check
      %p100 = pneg %p99
    $region18: #{tpu_custom_call.1} parent=5 // pred_check_branch
      %102 = sbr.rel (%p100) target = $region20
    $region19: #{tpu_custom_call.1} parent=5 // pred_region
      // Predicated region
      $region21: #{tpu_custom_call.1} parent=19 // pred_check
        %p103 = pneg %p28
      $region22: #{tpu_custom_call.1} parent=19 // pred_check_branch
        %105 = sbr.rel (%p103) target = $region24
      $region23: #{tpu_custom_call.1} parent=19 // pred_region
        %p106 = scmp.lt.s32.totalorder %s8, 7
        %s107 = scalar_select %p106, %s8, 7
        %s108 = smul.addr %s107, 4
        %s109 = scalar_lea.vmem %s0, %s108
      $region24: #{tpu_custom_call.1} parent=19 // pred_fallthru
        _
    $region20: #{tpu_custom_call.1} parent=5 // pred_fallthru
      _
    %p110 = scmp.le.s32.totalorder 1, %s8
    %p111 = scmp.lt.s32.totalorder %s8, 9
    %p112 = pnand %p110, %p111
    %p113 = pneg %p112
    // Predicated region
    $region25: #{tpu_custom_call.1} parent=5 // pred_check
      _
    $region26: #{tpu_custom_call.1} parent=5 // pred_check_branch
      %115 = sbr.rel (%p112) target = $region28
    $region27: #{tpu_custom_call.1} parent=5 // pred_region
      %s116 = ssub.s32 %s8, 1
      %p117 = scmp.lt.s32.totalorder %s13, 7
      %s118 = scalar_select %p117, %s13, 7
      %s119 = smul.addr %s118, 4
      %s120 = scalar_lea.vmem %s0, %s119
      %p121 = pneg %p34
      %p122 = pneg %p31
      %p123 = pneg %p55
      %p124 = pneg %p52
      %p125 = pneg %p81
      %p126 = pneg %p78
      %p127 = scmp.lt.s32.totalorder %s13, 7
      %s128 = scalar_select %p127, %s13, 7
      %s129 = smul.addr %s128, 4
      %s130 = scalar_lea.vmem %s2, %s129
      %p131 = scmp.lt.s32.totalorder %s13, 7
      %s132 = scalar_select %p131, %s13, 7
      %s133 = smul.addr %s132, 4
      %s134 = scalar_lea.vmem %s0, %s133
      %p135 = scmp.lt.s32.totalorder %s13, 7
      %s136 = scalar_select %p135, %s13, 7
      %s137 = smul.addr %s136, 4
      %s138 = scalar_lea.vmem %s2, %s137
      %v139 = vld [vmem:[%s1] sm:$0xff]
      %p140 = scmp.eq.s32.totalorder %s13, 0
      // Predicated region
      $region29: #{tpu_custom_call.1} parent=27 // pred_check
        %p141 = pneg %p140
      $region30: #{tpu_custom_call.1} parent=27 // pred_check_branch
        %143 = sbr.rel (%p141) target = $region32
      $region31: #{tpu_custom_call.1} parent=27 // pred_region
        %vm144 = vcmask 31749
        %145 = vst.msk [vmem:[#allocation2 - $0x5] sm:$0xe0] %vm144, %v139
      $region32: #{tpu_custom_call.1} parent=27 // pred_fallthru
        _
      %v146 = vld [vmem:[%s134] sm:$0x7]
      %v147 = vld [vmem:[#allocation2] sm:$0x7]
      %149 = vset.pattern.permute.xlu0 0
      %150 = vperm.xlu0 %149, %v146
      %v151 = vpop.permute.xlu0 %150
      %v153 = vperm.slane %v139, 0
      %v154 = vmul.f32 %v151, %v153
      %v155 = vperm.slane %v139, 4
      %v156 = vadd.f32 %v155, %v154
      %157 = vset.pattern.permute.xlu0 1
      %158 = vperm.xlu0 %157, %v146
      %v159 = vpop.permute.xlu0 %158
      %v161 = vperm.slane %v139, 1
      %v162 = vmul.f32 %v159, %v161
      %v163 = vadd.f32 %v156, %v162
      %164 = vset.pattern.permute.xlu0 2
      %165 = vperm.xlu0 %164, %v146
      %v166 = vpop.permute.xlu0 %165
      %v168 = vperm.slane %v139, 2
      %v169 = vmul.f32 %v166, %v168
      %v170 = vadd.f32 %v163, %v169
      %171 = vset.pattern.permute.xlu0 3
      %172 = vperm.xlu0 %171, %v146
      %v173 = vpop.permute.xlu0 %172
      %v175 = vperm.slane %v139, 3
      %v176 = vmul.f32 %v173, %v175
      %v177 = vadd.f32 %v170, %v176
      %vm178 = vcmask 26624
      %v179 = vsel %vm178, %v177, 0.0
      %180 = vadd.xlane.f32.xlu0 %v179
      %v181 = vpop.xlane.xlu0 %180
      %v182 = vrot.slane %v181, 4
      %v183 = vadd.f32 %v181, %v182
      %v184 = vrot.slane %v183, 2
      %v185 = vadd.f32 %v183, %v184
      %v186 = vrot.slane %v185, 1
      %v187 = vadd.f32 %v185, %v186
      %s188 = vtos %v187
      %p189 = scmp.gt.f32.partialorder %s188, 0.0
      %v190 = vsub.f32 0.0, %v177
      %s191 = scalar_select %p189, 1, 0
      %v192 = vstv %s191
      %vm193 = vcmp.eq.s32.totalorder %v192, 1
      %v194 = vsel %vm193, %v177, %v190
      %v195 = vadd.f32 %v194, %v147
      %v196 = vtanh.pop %v195
      %197 = vst.msk [vmem:[#allocation2] sm:$0x7] %vm178, %v196
      %198 = vst.msk [vmem:[%s138] sm:$0x7] %vm178, %v196
      %p199 = scmp.lt.s32.totalorder %s13, 7
      %s200 = scalar_select %p199, %s13, 7
      %s201 = smul.addr %s200, 4
      %s202 = scalar_lea.vmem %s2, %s201
      // Predicated region
      $region33: #{tpu_custom_call.1} parent=27 // pred_check
        %p203 = pneg %p78
      $region34: #{tpu_custom_call.1} parent=27 // pred_check_branch
        %205 = sbr.rel (%p203) target = $region36
      $region35: #{tpu_custom_call.1} parent=27 // pred_region
        _
      $region36: #{tpu_custom_call.1} parent=27 // pred_fallthru
        _
    $region28: #{tpu_custom_call.1} parent=5 // pred_fallthru
      _
    %p206 = scmp.le.s32.totalorder 2, %s8
    // Predicated region
    $region37: #{tpu_custom_call.1} parent=5 // pred_check
      %p207 = pneg %p206
    $region38: #{tpu_custom_call.1} parent=5 // pred_check_branch
      %209 = sbr.rel (%p207) target = $region40
    $region39: #{tpu_custom_call.1} parent=5 // pred_region
      %s210 = ssub.s32 %s8, 2
      // Predicated region
      $region41: #{tpu_custom_call.1} parent=39 // pred_check
        %p211 = pneg %p84
      $region42: #{tpu_custom_call.1} parent=39 // pred_check_branch
        %213 = sbr.rel (%p211) target = $region44
      $region43: #{tpu_custom_call.1} parent=39 // pred_region
        %p214 = scmp.lt.s32.totalorder %s14, 7
        %s215 = scalar_select %p214, %s14, 7
        %s216 = smul.addr %s215, 4
        %s217 = scalar_lea.vmem %s2, %s216
      $region44: #{tpu_custom_call.1} parent=39 // pred_fallthru
        _
    $region40: #{tpu_custom_call.1} parent=5 // pred_fallthru
      _
  $region6: #{tpu_custom_call.1} parent=0 // loop_footer
    %s12 = sadd.s32 1, %s8
  $region7: #{tpu_custom_call.1} parent=0 // loop_footer_branch
    %7 = sbr.rel target = $region3
  $region8: #{tpu_custom_call.1} parent=0 // loop_exit
    _

</llo_original>
